<compile_context>
chip_gen: v6e
topology: v6e:2x2x1
jax: 0.10.0
libtpu: 0.0.40
codegen_flags: <defaults>
</compile_context>

<pallas_src>
import functools
import math

import jax
import jax.numpy as jnp
from jax import lax
from jax.experimental import pallas as pl
from jax.experimental.pallas import tpu as pltpu


def _choose_tile(dim, unit, max_tile):
    """Pick a block size for one axis.

    Returns the full `dim` when it already fits under `max_tile` (a
    full-extent block is always layout-legal, even if unaligned), otherwise
    the largest multiple of `unit` <= `max_tile` that divides `dim` exactly
    (no ragged tail), otherwise `max_tile` itself (the trailing partial block
    is then handled by Pallas' masked boundary reads/writes).
    """
    if dim <= max_tile:
        return dim
    t = (max_tile // unit) * unit
    while t >= unit:
        if dim % t == 0:
            return t
        t -= unit
    return (max_tile // unit) * unit


def _adaface_margin_kernel(labels_ref, ft_ref, x_ref, out_ref, *, s, tile_c):
    """out = where(col == label, final_target, x) * s on one (tb, tc) tile.

    Per-row scalars (label, precomputed final target logit) arrive as (tb, 1)
    columns and broadcast across the 128-lane axis.  Only ~3 VPU ops per
    element, so the kernel stays HBM-bandwidth-bound at any tile width.
    """
    j = pl.program_id(1)                                   # class-column tile
    x = x_ref[...].astype(jnp.float32)                     # (tb, tc)
    col = j * tile_c + lax.broadcasted_iota(jnp.int32, x.shape, 1)
    is_target = col == labels_ref[...]                     # label == -1 never matches
    out_ref[...] = (jnp.where(is_target, ft_ref[...], x) * s).astype(out_ref.dtype)


def adaface_forward(logits, safe_norms, labels, batch_mean, batch_std, *,
                    m=0.4, h=0.333, s=64.0, eps=0.001, t_alpha=1.0,
                    max_tile_b=256, max_tile_c=2048):
    """Pure (jit-compatible) AdaFace forward.

    Returns (scaled_logits, new_batch_mean, new_batch_std).
    """
    B, C = logits.shape
    out_dtype = logits.dtype
    theta = math.cos(math.pi - m)
    sinmm = math.sin(math.pi - m) * m

    # ---- running-statistics buffer update (torch.no_grad() block) ----------
    norms = safe_norms.astype(jnp.float32).reshape(B, 1)
    mean = lax.stop_gradient(jnp.mean(norms))
    std = lax.stop_gradient(jnp.std(norms, ddof=1))        # torch.std is unbiased
    new_mean = mean * t_alpha + (1.0 - t_alpha) * batch_mean
    new_std = std * t_alpha + (1.0 - t_alpha) * batch_std

    # ---- per-row (B-sized) margin math, hoisted out of the (B, C) hot loop --
    margin_scaler = jnp.clip((norms - new_mean) / (new_std + eps) * h, -1.0, 1.0)
    g_angular = -m * margin_scaler                         # (B, 1)
    g_add = m + m * margin_scaler                          # (B, 1)

    labels = labels.reshape(B).astype(jnp.int32)
    valid = labels != -1
    safe_labels = jnp.where(valid, labels, 0)
    target_logit = jnp.take_along_axis(
        logits, safe_labels.reshape(B, 1), axis=1).astype(jnp.float32)   # (B, 1)
    # clamp is an intentional (NaN-safe) deviation; |target_logit| <= 1 anyway.
    sin_theta = jnp.sqrt(jnp.maximum(1.0 - target_logit * target_logit, 0.0))
    cos_theta_m = (target_logit * jnp.cos(g_angular)
                   - sin_theta * jnp.sin(g_angular) - g_add)
    final_target = jnp.where(target_logit > theta, cos_theta_m,
                             target_logit - sinmm).astype(jnp.float32)   # (B, 1)
    labels_col = labels.reshape(B, 1)

    # ---- Pallas kernel: elementwise margin-scatter + scale over (B, C) ------
    itemsize = jnp.dtype(out_dtype).itemsize
    sub_unit = max(8, 32 // max(itemsize, 1))      # f32: 8, bf16: 16, int8: 32
    tile_b = _choose_tile(B, sub_unit, max_tile_b)
    tile_c = _choose_tile(C, 128, max_tile_c)
    grid = (pl.cdiv(B, tile_b), pl.cdiv(C, tile_c))

    row_spec = pl.BlockSpec((tile_b, 1), lambda i, j: (i, 0))
    kernel = functools.partial(_adaface_margin_kernel, s=float(s), tile_c=tile_c)

    out = pl.pallas_call(
        kernel,
        out_shape=jax.ShapeDtypeStruct((B, C), out_dtype),
        grid=grid,
        in_specs=[
            row_spec,                                           # labels (int32)
            row_spec,                                           # final_target (f32)
            pl.BlockSpec((tile_b, tile_c), lambda i, j: (i, j)),  # logits tile
        ],
        out_specs=pl.BlockSpec((tile_b, tile_c), lambda i, j: (i, j)),
        input_output_aliases={2: 0},                # update logits in place
        compiler_params=pltpu.CompilerParams(
            dimension_semantics=("parallel", "parallel")),
    )(labels_col, final_target, logits)
    return out, new_mean, new_std


class AdaFacePallas:
    """Stateful convenience wrapper mirroring the PyTorch AdaFace module.

    The heavy (B, C) work runs in the Pallas kernel; the running-statistics
    buffers are returned functionally by `adaface_forward` and written back
    here (eager-mode only -- under jit, thread the buffers explicitly).
    """

    def __init__(self, embedding_size=512, classnum=2570, m=0.4, h=0.333,
                 s=64.0, t_alpha=1.0):
        self.embedding_size = embedding_size
        self.classnum = classnum
        self.m = m
        self.eps = 0.001
        self.h = h
        self.s = s
        self.t_alpha = t_alpha
        # buffers (deterministic init, same as torch registration)
        self.t = jnp.zeros((1,), jnp.float32)
        self.batch_mean = jnp.ones((1,), jnp.float32) * 20.0
        self.batch_std = jnp.ones((1,), jnp.float32) * 100.0
        self.cos_m = math.cos(m)
        self.sin_m = math.sin(m)
        self.theta = math.cos(math.pi - m)
        self.sinmm = math.sin(math.pi - m) * m

    def __call__(self, logits, safe_norms, labels):
        out, new_mean, new_std = adaface_forward(
            logits, safe_norms, labels, self.batch_mean, self.batch_std,
            m=self.m, h=self.h, s=self.s, eps=self.eps, t_alpha=self.t_alpha)
        # Eager-mode buffer write-back (torch register_buffer semantics).
        self.batch_mean, self.batch_std = new_mean, new_std
        return out


def _reference_forward(module, logits, safe_norms, labels,
                       batch_mean0, batch_std0):
    """Pure-jnp reference mirroring the PyTorch forward (f32 math)."""
    m, h, s, eps, t_alpha = module.m, module.h, module.s, module.eps, module.t_alpha
    theta, sinmm = module.theta, module.sinmm
    mean = jnp.mean(safe_norms)
    std = jnp.std(safe_norms, ddof=1)
    bm = mean * t_alpha + (1 - t_alpha) * batch_mean0
    bs = std * t_alpha + (1 - t_alpha) * batch_std0
    ms = jnp.clip((safe_norms - bm) / (bs + eps) * h, -1.0, 1.0)       # (B,1)
    g_ang = -m * ms
    cos_g = jnp.cos(g_ang).reshape(-1)
    sin_g = jnp.sin(g_ang).reshape(-1)
    g_add = (m + m * ms).reshape(-1)

    B, C = logits.shape
    valid = labels != -1
    safe_labels = jnp.where(valid, labels, 0)
    target_logit = logits[jnp.arange(B), safe_labels]
    sin_theta = jnp.sqrt(1.0 - target_logit ** 2)
    cos_theta_m = target_logit * cos_g - sin_theta * sin_g - g_add
    final = jnp.where(target_logit > theta, cos_theta_m, target_logit - sinmm)
    onehot = (jax.nn.one_hot(safe_labels, C, dtype=jnp.float32)
              * valid[:, None].astype(jnp.float32))
    new_logits = logits * (1.0 - onehot) + onehot * final[:, None]
    return new_logits * s


if __name__ == "__main__":
    root = jax.random.PRNGKey(0)

    def make_inputs(key, B, C, dtype, ignore_first=False):
        k1, k2, k3 = jax.random.split(key, 3)
        logits = jnp.tanh(jax.random.normal(k1, (B, C), jnp.float32)).astype(dtype)
        safe_norms = 20.0 + 5.0 * jax.random.normal(k2, (B, 1), jnp.float32)
        labels = jax.random.randint(k3, (B,), 0, C, dtype=jnp.int32)
        if ignore_first:
            labels = labels.at[0].set(-1)
        return logits, safe_norms, labels

    keys = jax.random.split(root, 4)

    # Case 1: aligned small shapes, default (wide) tiles -> one lane-dense block.
    B, C = 8, 512
    logits, safe_norms, labels = make_inputs(keys[0], B, C, jnp.float32)
    mod = AdaFacePallas(classnum=C)
    ref = _reference_forward(mod, logits, safe_norms, labels,
                             mod.batch_mean, mod.batch_std)
    out = jax.block_until_ready(mod(logits, safe_norms, labels))
    assert jnp.allclose(out, ref, atol=1e-4, rtol=1e-4), "case1 mismatch"

    # Case 2: unaligned B and C (full-dim blocks), one ignore (-1) label.
    B, C = 5, 200
    logits, safe_norms, labels = make_inputs(keys[1], B, C, jnp.float32,
                                             ignore_first=True)
    mod = AdaFacePallas(classnum=C)
    ref = _reference_forward(mod, logits, safe_norms, labels,
                             mod.batch_mean, mod.batch_std)
    out = jax.block_until_ready(mod(logits, safe_norms, labels))
    assert jnp.allclose(out, ref, atol=1e-4, rtol=1e-4), "case2 mismatch"

    # Case 3: force a (2, 4) grid to exercise multi-tile indexing on both axes.
    B, C = 16, 512
    logits, safe_norms, labels = make_inputs(keys[2], B, C, jnp.float32)
    mod = AdaFacePallas(classnum=C)
    ref = _reference_forward(mod, logits, safe_norms, labels,
                             mod.batch_mean, mod.batch_std)
    out, _, _ = adaface_forward(
        logits, safe_norms, labels, mod.batch_mean, mod.batch_std,
        m=mod.m, h=mod.h, s=mod.s, eps=mod.eps, t_alpha=mod.t_alpha,
        max_tile_b=8, max_tile_c=128)
    out = jax.block_until_ready(out)
    assert jnp.allclose(out, ref, atol=1e-4, rtol=1e-4), "case3 mismatch"

    # Case 4: bf16 I/O (HBM traffic halved); kernel upcasts to f32 internally.
    B, C = 16, 384
    logits, safe_norms, labels = make_inputs(keys[3], B, C, jnp.bfloat16)
    mod = AdaFacePallas(classnum=C)
    ref = _reference_forward(mod, logits.astype(jnp.float32), safe_norms, labels,
                             mod.batch_mean, mod.batch_std)
    out = jax.block_until_ready(mod(logits, safe_norms, labels))
    assert out.dtype == jnp.bfloat16, "case4 dtype"
    assert jnp.allclose(out.astype(jnp.float32), ref, atol=0.5, rtol=2e-2), \
        "case4 mismatch"

    print("KERNEL_OK")
</pallas_src>

<mosaic_0001>
module attributes {stable_mosaic.version = 11 : i64} {
  func.func @_adaface_margin_kernel(%arg0: i32, %arg1: i32, %arg2: memref<8x1xi32, #tpu.memory_space<vmem>>, %arg3: memref<8x1xf32, #tpu.memory_space<vmem>>, %arg4: memref<8x512xf32, #tpu.memory_space<vmem>>, %arg5: memref<8x512xf32, #tpu.memory_space<vmem>>) attributes {dimension_semantics = [#tpu.dimension_semantics<parallel>, #tpu.dimension_semantics<parallel>], iteration_bounds = array<i64: 1, 1>, scalar_prefetch = 0 : i64, scratch_operands = 0 : i64, tpu.core_type = #tpu.core_type<tc>, window_params = [{transform_indices = @transform_0, window_bounds = array<i64: 8, 1>}, {transform_indices = @transform_1, window_bounds = array<i64: 8, 1>}, {transform_indices = @transform_2, window_bounds = array<i64: 8, 512>}, {transform_indices = @transform_3, window_bounds = array<i64: 8, 512>}]} {
    %c0 = arith.constant 0 : index
    %c0_0 = arith.constant 0 : index
    %0 = vector.load %arg4[%c0, %c0_0] : memref<8x512xf32, #tpu.memory_space<vmem>>, vector<8x512xf32>
    %c512_i32 = arith.constant 512 : i32
    %1 = arith.muli %arg1, %c512_i32 : i32
    %2 = tpu.iota {dimensions = array<i32: 1>} : vector<8x512xi32>
    %3 = vector.broadcast %1 : i32 to vector<8x512xi32>
    %4 = arith.addi %3, %2 : vector<8x512xi32>
    %c0_1 = arith.constant 0 : index
    %c0_2 = arith.constant 0 : index
    %5 = vector.load %arg2[%c0_1, %c0_2] : memref<8x1xi32, #tpu.memory_space<vmem>>, vector<8x1xi32>
    %6 = vector.broadcast %5 : vector<8x1xi32> to vector<8x512xi32>
    %7 = arith.cmpi eq, %4, %6 : vector<8x512xi32>
    %c0_3 = arith.constant 0 : index
    %c0_4 = arith.constant 0 : index
    %8 = vector.load %arg3[%c0_3, %c0_4] : memref<8x1xf32, #tpu.memory_space<vmem>>, vector<8x1xf32>
    %9 = vector.shape_cast %8 : vector<8x1xf32> to vector<8x1xf32>
    %10 = vector.broadcast %9 : vector<8x1xf32> to vector<8x512xf32>
    %11 = arith.select %7, %10, %0 : vector<8x512xi1>, vector<8x512xf32>
    %cst = arith.constant 6.400000e+01 : f32
    %12 = vector.broadcast %cst : f32 to vector<8x512xf32>
    %13 = arith.mulf %11, %12 : vector<8x512xf32>
    %c0_5 = arith.constant 0 : index
    %c0_6 = arith.constant 0 : index
    %14 = vector.load %arg5[%c0_5, %c0_6] : memref<8x512xf32, #tpu.memory_space<vmem>>, vector<8x512xf32>
    tpu.vector_store %arg5[%c0_5, %c0_6], %13 {strides = array<i32>} : memref<8x512xf32, #tpu.memory_space<vmem>>, vector<8x512xf32>,
    return
  }
  func.func @transform_0(%arg0: i32, %arg1: i32) -> (i32, i32) {
    %c0_i32 = arith.constant 0 : i32
    %c0_i32_0 = arith.constant 0 : i32
    return %arg0, %c0_i32 : i32, i32
  }
  func.func @transform_1(%arg0: i32, %arg1: i32) -> (i32, i32) {
    %c0_i32 = arith.constant 0 : i32
    %c0_i32_0 = arith.constant 0 : i32
    return %arg0, %c0_i32 : i32, i32
  }
  func.func @transform_2(%arg0: i32, %arg1: i32) -> (i32, i32) {
    %c0_i32 = arith.constant 0 : i32
    return %arg0, %arg1 : i32, i32
  }
  func.func @transform_3(%arg0: i32, %arg1: i32) -> (i32, i32) {
    %c0_i32 = arith.constant 0 : i32
    return %arg0, %arg1 : i32, i32
  }
}

</mosaic_0001>

<llo_original>
// kernel: tpu_custom_call.1
$region0: #{tpu_custom_call.1}
  #allocation0 [shape = 'u32[]', space=smem, size = 0x4, offset = 0x4, fixed_abs, tag = 'smem constant byte address 0x4 - core index']
  #allocation1 [shape = 'u32[144,128]{1,0:T(1,128)}', space=vmem, size = 0x12000, scoped, tag = 'internal scratch']
  %s0 = inlined_call_operand.vmem [shape: s32[8,1], index: 0, kind: input, shape index: {}]
  %s1 = inlined_call_operand.vmem [shape: f32[8,1], index: 1, kind: input, shape index: {}]
  %s2 = inlined_call_operand.hbm [shape: f32[8,512], index: 2, kind: input, shape index: {}, may-alias: {2,3}]
  %s3 = inlined_call_operand.hbm [shape: f32[8,512], index: 3, kind: output, shape index: {}, may-alias: {2,3}]
  %s4 = sld [smem:[#allocation0]]
  $region26: #{tpu_custom_call.1} parent=0
    _
  %s6 = ssub.s32 1, %s4
  %s7 = scalar_select 0, %s6, %s4
  $region1: #{tpu_custom_call.1} parent=0
    #allocation2 [shape = 'u8[16384]{0}', space=vmem, size = 0x4000, scoped, tag = 'input window, operand 2, single buffered']
    #allocation3 [shape = 's32[1]{0}', space=sflag, size = 0x4, scoped, tag = 'scoped memory for tpu_custom_call.1']
    #allocation4 [shape = 's32[1]{0}', space=sflag, size = 0x4, scoped, tag = 'scoped memory for tpu_custom_call.1']
    #allocation5 [shape = 'u8[16384]{0}', space=vmem, size = 0x4000, scoped, tag = 'output window, operand 0, single buffered']
    %8 = vsyncpa [#allocation3], 0
    %9 = vsyncpa [#allocation4], 0
    // Predicated region
    $region2: #{tpu_custom_call.1} parent=1 // pred_check
      _
    $region3: #{tpu_custom_call.1} parent=1 // pred_check_branch
      %11 = sbr.rel (0) target = $region5
    $region4: #{tpu_custom_call.1} parent=1 // pred_region
      _
    $region5: #{tpu_custom_call.1} parent=1 // pred_fallthru
      _
    // Predicated region
    $region6: #{tpu_custom_call.1} parent=1 // pred_check
      _
    $region7: #{tpu_custom_call.1} parent=1 // pred_check_branch
      %13 = sbr.rel (0) target = $region9
    $region8: #{tpu_custom_call.1} parent=1 // pred_region
      _
    $region9: #{tpu_custom_call.1} parent=1 // pred_fallthru
      _
    // Predicated region
    $region10: #{tpu_custom_call.1} parent=1 // pred_check
      _
    $region11: #{tpu_custom_call.1} parent=1 // pred_check_branch
      %15 = sbr.rel (0) target = $region13
    $region12: #{tpu_custom_call.1} parent=1 // pred_region
      %s17 = ssub.s32 512, 512
      %18 = vsyncadd [#allocation3], %s17
      %s20 = sshll.u32 [#allocation2], 4
      %s21 = int_to_ptr.vmem [resolvable:$true] %s20
      %23 = dma.hbm_to_vmem [thread:$0]  %s2, 512, %s21, [#allocation3]
    $region13: #{tpu_custom_call.1} parent=1 // pred_fallthru
      _
    // Predicated region
    $region14: #{tpu_custom_call.1} parent=1 // pred_check
      _
    $region15: #{tpu_custom_call.1} parent=1 // pred_check_branch
      %25 = sbr.rel (0) target = $region17
    $region16: #{tpu_custom_call.1} parent=1 // pred_region
      %26 = dma.done [#allocation3], 512
    $region17: #{tpu_custom_call.1} parent=1 // pred_fallthru
      _
    %v27 = vld [vmem:[#allocation2] sm:$0xff]
    %v28 = vld [vmem:[#allocation2 + $0x8] sm:$0xff]
    %v29 = vld [vmem:[#allocation2 + $0x10] sm:$0xff]
    %v30 = vld [vmem:[#allocation2 + $0x18] sm:$0xff]
    %s31 = smul.u32 0, 512
    %v32 = vlaneseq
    %v33 = vand.u32 %v32, 127
    %v34 = vadd.s32 %v33, 128
    %v35 = vadd.s32 %v33, 256
    %v36 = vadd.s32 %v33, 384
    %v37 = vstv %s31
    %v38 = vadd.s32 %v37, %v33
    %v39 = vadd.s32 %v37, %v34
    %v40 = vadd.s32 %v37, %v35
    %v41 = vadd.s32 %v37, %v36
    %v42 = vld [vmem:[%s0] sm:$0xff]
    %43 = vset.pattern.permute.xlu0 0
    %44 = vperm.xlu0 %43, %v42
    %v45 = vpop.permute.xlu0 %44
    %vm46 = vcmp.eq.s32.totalorder %v38, %v45
    %vm47 = vcmp.eq.s32.totalorder %v39, %v45
    %vm48 = vcmp.eq.s32.totalorder %v40, %v45
    %vm49 = vcmp.eq.s32.totalorder %v41, %v45
    %v50 = vld [vmem:[%s1] sm:$0xff]
    %52 = vset.pattern.permute.xlu0 0
    %53 = vperm.xlu0 %52, %v50
    %v54 = vpop.permute.xlu0 %53
    %v56 = vsel %vm46, %v54, %v27
    %v57 = vsel %vm47, %v54, %v28
    %v58 = vsel %vm48, %v54, %v29
    %v59 = vsel %vm49, %v54, %v30
    %v60 = vmul.f32 %v56, 64.0
    %v61 = vmul.f32 %v57, 64.0
    %v62 = vmul.f32 %v58, 64.0
    %v63 = vmul.f32 %v59, 64.0
    %64 = vst [vmem:[#allocation5] sm:$0xff] %v60
    %65 = vst [vmem:[#allocation5 + $0x8] sm:$0xff] %v61
    %66 = vst [vmem:[#allocation5 + $0x10] sm:$0xff] %v62
    %67 = vst [vmem:[#allocation5 + $0x18] sm:$0xff] %v63
    // Predicated region
    $region18: #{tpu_custom_call.1} parent=1 // pred_check
      _
    $region19: #{tpu_custom_call.1} parent=1 // pred_check_branch
      %69 = sbr.rel (0) target = $region21
    $region20: #{tpu_custom_call.1} parent=1 // pred_region
      %s71 = ssub.s32 512, 512
      %72 = vsyncadd [#allocation4], %s71
      %s74 = sshll.u32 [#allocation5], 4
      %s75 = int_to_ptr.vmem [resolvable:$true] %s74
      %77 = dma.vmem_to_hbm [thread:$0]  %s75, 512, %s3, [#allocation4]
    $region21: #{tpu_custom_call.1} parent=1 // pred_fallthru
      _
    // Predicated region
    $region22: #{tpu_custom_call.1} parent=1 // pred_check
      _
    $region23: #{tpu_custom_call.1} parent=1 // pred_check_branch
      %79 = sbr.rel (0) target = $region25
    $region24: #{tpu_custom_call.1} parent=1 // pred_region
      %80 = dma.done [#allocation4], 512
    $region25: #{tpu_custom_call.1} parent=1 // pred_fallthru
      _
    %81 = vsyncpa [#allocation3], 1
    %82 = vsyncpa [#allocation4], 1

</llo_original>
